<compile_context>
chip_gen: v7x
topology: tpu7x:2x2x1
jax: 0.10.0
libtpu: 0.0.40
codegen_flags: <defaults>
</compile_context>

<pallas_src>
import functools

import jax
import jax.numpy as jnp
from jax import lax
from jax.experimental import pallas as pl
from jax.experimental.pallas import tpu as pltpu


# Contract last dim of LHS with last dim of RHS: (m, k) x (n, k) -> (m, n).
_NT_DIMS = (((1,), (1,)), ((), ()))


def _gated_mlp_kernel(x_ref, wy_ref, by_ref, wg_ref, bg_ref, w2_ref, b2_ref,
                      o_ref):
    # x_ref:  (tm, d_in)
    # wy_ref: (hidden, d_in)    torch (out, in) layout, y-half of W1
    # wg_ref: (hidden, d_in)    gate-half of W1
    # by_ref/bg_ref: (1, hidden)
    # w2_ref: (d_out, hidden)   torch (out, in) layout
    # b2_ref: (1, d_out)
    # o_ref:  (tm, d_out)
    x = x_ref[...]

    # fc1 as two lane-aligned matmuls (no lane-axis split of an intermediate;
    # hidden need not be a multiple of 128).
    y = lax.dot_general(x, wy_ref[...], _NT_DIMS,
                        preferred_element_type=jnp.float32) + by_ref[...]
    g = lax.dot_general(x, wg_ref[...], _NT_DIMS,
                        preferred_element_type=jnp.float32) + bg_ref[...]

    # y * SiLU(gate); sigmoid lands on the EUP slot, math stays f32.
    act = y * (g * jax.nn.sigmoid(g))

    # fc2 (accumulate in f32, store in the IO dtype).
    out = lax.dot_general(act.astype(x.dtype), w2_ref[...], _NT_DIMS,
                          preferred_element_type=jnp.float32) + b2_ref[...]
    o_ref[...] = out.astype(o_ref.dtype)
    # TODO(synk): nn.Dropout is identity in eval mode; training-time dropout
    # (pltpu.prng_random_bits mask) is not implemented here.


def _round_up(x, n):
    return (x + n - 1) // n * n


def _half_block_map(blk):
    # Constant index_map selecting half `blk` of W1 along its output axis.
    return lambda i, _blk=blk: (_blk, 0)


def _const_map(i):
    return (0, 0)


def _call_pallas(xm, wy_arr, by, wg_arr, bg, w2, b2r, *, hidden, tm,
                 wy_blk, wg_blk, single_buffer_weights):
    m_pad, d_in = xm.shape
    d_out = w2.shape[0]
    itemsize = jnp.dtype(xm.dtype).itemsize

    weight_mode = {}
    if single_buffer_weights:
        # Grid-invariant operands: one resident VMEM buffer instead of two.
        weight_mode = dict(pipeline_mode=pl.Buffered(1))

    # VMEM budget: resident weights/biases + double-buffered x/out tiles +
    # f32 intermediates, with slack; clamped to the v7x per-core budget.
    wbuf = 1 if single_buffer_weights else 2
    wbytes = wbuf * (2 * hidden * d_in + hidden * d_out + 2 * hidden + d_out
                     ) * jnp.dtype(wy_arr.dtype).itemsize
    iobytes = 2 * tm * (d_in + d_out) * itemsize
    fbytes = tm * (2 * hidden + d_out) * 4
    vmem_limit = int(1.5 * (wbytes + iobytes + fbytes)) + (4 << 20)
    vmem_limit = min(max(vmem_limit, 32 << 20), 64 << 20)
    # TODO(synk): if resident weights ever exceed the VMEM budget (very large
    # hidden on v7x's 64 MiB), add a grid axis over `hidden` with an f32
    # accumulator scratch instead of keeping W1/W2 fully resident.

    # Advisory cost estimate so XLA schedules neighbors around the call well.
    flops = 2 * m_pad * d_in * (2 * hidden) + 2 * m_pad * hidden * d_out \
        + 4 * m_pad * hidden
    bytes_accessed = (m_pad * (d_in + d_out)) * itemsize \
        + (2 * hidden * d_in + hidden * d_out + 2 * hidden + d_out) \
        * jnp.dtype(wy_arr.dtype).itemsize
    cost = pl.CostEstimate(flops=flops, transcendentals=m_pad * hidden,
                           bytes_accessed=bytes_accessed)

    return pl.pallas_call(
        _gated_mlp_kernel,
        out_shape=jax.ShapeDtypeStruct((m_pad, d_out), xm.dtype),
        grid_spec=pltpu.PrefetchScalarGridSpec(
            num_scalar_prefetch=0,
            grid=(m_pad // tm,),
            in_specs=[
                pl.BlockSpec((tm, d_in), lambda i: (i, 0)),            # x tile
                pl.BlockSpec((hidden, d_in), _half_block_map(wy_blk),
                             **weight_mode),                           # W1 y-half
                pl.BlockSpec((1, hidden), _const_map, **weight_mode),  # b1 y-half
                pl.BlockSpec((hidden, d_in), _half_block_map(wg_blk),
                             **weight_mode),                           # W1 gate-half
                pl.BlockSpec((1, hidden), _const_map, **weight_mode),  # b1 gate-half
                pl.BlockSpec((d_out, hidden), _const_map, **weight_mode),  # W2
                pl.BlockSpec((1, d_out), _const_map, **weight_mode),       # b2
            ],
            out_specs=pl.BlockSpec((tm, d_out), lambda i: (i, 0)),
        ),
        compiler_params=pltpu.CompilerParams(
            dimension_semantics=("parallel",),
            vmem_limit_bytes=vmem_limit,
        ),
        cost_estimate=cost,
    )(xm, wy_arr, by, wg_arr, bg, w2, b2r)


def gated_mlp(x, w1, b1, w2, b2, *, tm=256):
    """GatedMLP forward.  x: (..., d_in) -> (..., d_out).

    Weights are in torch nn.Linear layout: w1 (2*hidden, d_in), w2 (d_out,
    hidden).  `tm` is the token tile fed to the MXU per grid step; 256 suits
    the 256x256 MXU on v6e/v7x (use 128 on v5e).  For peak MXU throughput on
    v6e/v7x pass bf16 x / weights -- accumulation stays f32 in-kernel.
    For production, d_out should ideally be a multiple of 128 (lane-dense
    output stores); small d_out is handled but uses masked stores.
    """
    d_in = x.shape[-1]
    two_hidden = w1.shape[0]
    hidden = two_hidden // 2
    d_out = w2.shape[0]

    lead = x.shape[:-1]
    xm = x.reshape(-1, d_in)
    m = xm.shape[0]

    # Effective tile: a multiple of 8 (sublanes), no bigger than the padded
    # token count; pad tokens to a whole number of tiles (no divisibility
    # assert, so large MXU-friendly tm works for any batch*seq).
    tm_eff = _round_up(max(8, min(tm, _round_up(m, 8))), 8)
    m_pad = _round_up(m, tm_eff)
    if m_pad != m:
        xm = jnp.pad(xm, ((0, m_pad - m), (0, 0)))

    if hidden % 8 == 0:
        # Zero-copy split: pass W1 twice and let the BlockSpec index_map pick
        # the y / gate half -- no transpose or slice of the weights in HBM.
        wy_arr, wg_arr, wy_blk, wg_blk = w1, w1, 0, 1
    else:
        wy_arr, wg_arr, wy_blk, wg_blk = w1[:hidden], w1[hidden:], 0, 0

    by = b1[:hidden].reshape(1, hidden)
    bg = b1[hidden:].reshape(1, hidden)
    b2r = b2.reshape(1, d_out)

    call = functools.partial(_call_pallas, xm, wy_arr, by, wg_arr, bg, w2, b2r,
                             hidden=hidden, tm=tm_eff,
                             wy_blk=wy_blk, wg_blk=wg_blk)
    try:
        out = call(single_buffer_weights=True)
    except Exception:
        # pl.Buffered(1) not supported by this jax/Mosaic build: fall back to
        # the default double-buffered weight specs.
        out = call(single_buffer_weights=False)

    if m_pad != m:
        out = out[:m]
    return out.reshape(*lead, d_out)


def gated_mlp_reference(x, w1, b1, w2, b2):
    h = x @ w1.T + b1
    hidden = w1.shape[0] // 2
    y, gate = h[..., :hidden], h[..., hidden:]
    return (y * (gate * jax.nn.sigmoid(gate))) @ w2.T + b2


if __name__ == "__main__":
    # configs: d_model=32, embd_scale=1, mlp_scale=2.0, bias=True, dropout=0.0
    d_model, embd_scale, mlp_scale = 32, 1, 2.0
    in_features = d_model * embd_scale          # 32
    out_features = d_model * embd_scale         # 32
    hidden_features = int(mlp_scale * d_model)  # 64

    batch, seq = 2, 8

    key = jax.random.PRNGKey(0)
    kx, k1, kb1, k2, kb2 = jax.random.split(key, 5)

    x = jax.random.normal(kx, (batch, seq, in_features), dtype=jnp.float32)

    # Deterministic "Linear"-style init (uniform, torch weight layout (out, in)).
    bound1 = 1.0 / (in_features ** 0.5)
    w1 = jax.random.uniform(k1, (2 * hidden_features, in_features),
                            minval=-bound1, maxval=bound1, dtype=jnp.float32)
    b1 = jax.random.uniform(kb1, (2 * hidden_features,),
                            minval=-bound1, maxval=bound1, dtype=jnp.float32)
    bound2 = 1.0 / (hidden_features ** 0.5)
    w2 = jax.random.uniform(k2, (out_features, hidden_features),
                            minval=-bound2, maxval=bound2, dtype=jnp.float32)
    b2 = jax.random.uniform(kb2, (out_features,),
                            minval=-bound2, maxval=bound2, dtype=jnp.float32)

    out = gated_mlp(x, w1, b1, w2, b2)
    out = jax.block_until_ready(out)
    ref = gated_mlp_reference(x, w1, b1, w2, b2)
    assert out.shape == (batch, seq, out_features)
    assert jnp.allclose(out, ref, atol=2e-5, rtol=2e-5), "mismatch vs reference"

    # Ragged token count: exercises the padded-tile path (no divisibility req).
    x2 = jax.random.normal(jax.random.PRNGKey(1), (3, 5, in_features),
                           dtype=jnp.float32)
    out2 = jax.block_until_ready(gated_mlp(x2, w1, b1, w2, b2))
    ref2 = gated_mlp_reference(x2, w1, b1, w2, b2)
    assert out2.shape == (3, 5, out_features)
    assert jnp.allclose(out2, ref2, atol=2e-5, rtol=2e-5), "mismatch (ragged)"

    print("KERNEL_OK")
</pallas_src>

<mosaic_0001>
module attributes {stable_mosaic.version = 11 : i64} {
  func.func @_gated_mlp_kernel(%arg0: i32, %arg1: memref<16x32xf32, #tpu.memory_space<vmem>>, %arg2: memref<64x32xf32, #tpu.memory_space<vmem>>, %arg3: memref<1x64xf32, #tpu.memory_space<vmem>>, %arg4: memref<64x32xf32, #tpu.memory_space<vmem>>, %arg5: memref<1x64xf32, #tpu.memory_space<vmem>>, %arg6: memref<32x64xf32, #tpu.memory_space<vmem>>, %arg7: memref<1x32xf32, #tpu.memory_space<vmem>>, %arg8: memref<16x32xf32, #tpu.memory_space<vmem>>) attributes {dimension_semantics = [#tpu.dimension_semantics<parallel>], iteration_bounds = array<i64: 1>, scalar_prefetch = 0 : i64, scratch_operands = 0 : i64, tpu.core_type = #tpu.core_type<tc>, window_params = [{transform_indices = @transform_0, window_bounds = array<i64: 16, 32>}, {pipeline_mode = #tpu.pipeline_mode<synchronous>, transform_indices = @transform_1, window_bounds = array<i64: 64, 32>}, {pipeline_mode = #tpu.pipeline_mode<synchronous>, transform_indices = @transform_2, window_bounds = array<i64: 1, 64>}, {pipeline_mode = #tpu.pipeline_mode<synchronous>, transform_indices = @transform_3, window_bounds = array<i64: 64, 32>}, {pipeline_mode = #tpu.pipeline_mode<synchronous>, transform_indices = @transform_4, window_bounds = array<i64: 1, 64>}, {pipeline_mode = #tpu.pipeline_mode<synchronous>, transform_indices = @transform_5, window_bounds = array<i64: 32, 64>}, {pipeline_mode = #tpu.pipeline_mode<synchronous>, transform_indices = @transform_6, window_bounds = array<i64: 1, 32>}, {transform_indices = @transform_7, window_bounds = array<i64: 16, 32>}]} {
    %c0 = arith.constant 0 : index
    %c0_0 = arith.constant 0 : index
    %0 = vector.load %arg1[%c0, %c0_0] : memref<16x32xf32, #tpu.memory_space<vmem>>, vector<16x32xf32>
    %c0_1 = arith.constant 0 : index
    %c0_2 = arith.constant 0 : index
    %1 = vector.load %arg2[%c0_1, %c0_2] : memref<64x32xf32, #tpu.memory_space<vmem>>, vector<64x32xf32>
    %cst = arith.constant dense<0.000000e+00> : vector<16x64xf32>
    %2 = tpu.matmul %0, %1, %cst {dimension_numbers = #tpu.dot_dimension_numbers<[1], [1], [0], [0], [0, 0, 1, 0], [], []>} : vector<16x32xf32>, vector<64x32xf32>, vector<16x64xf32> -> vector<16x64xf32>
    %c0_3 = arith.constant 0 : index
    %c0_4 = arith.constant 0 : index
    %3 = vector.load %arg3[%c0_3, %c0_4] : memref<1x64xf32, #tpu.memory_space<vmem>>, vector<1x64xf32>
    %4 = vector.broadcast %3 : vector<1x64xf32> to vector<16x64xf32>
    %5 = arith.addf %2, %4 : vector<16x64xf32>
    %c0_5 = arith.constant 0 : index
    %c0_6 = arith.constant 0 : index
    %6 = vector.load %arg4[%c0_5, %c0_6] : memref<64x32xf32, #tpu.memory_space<vmem>>, vector<64x32xf32>
    %cst_7 = arith.constant dense<0.000000e+00> : vector<16x64xf32>
    %7 = tpu.matmul %0, %6, %cst_7 {dimension_numbers = #tpu.dot_dimension_numbers<[1], [1], [0], [0], [0, 0, 1, 0], [], []>} : vector<16x32xf32>, vector<64x32xf32>, vector<16x64xf32> -> vector<16x64xf32>
    %c0_8 = arith.constant 0 : index
    %c0_9 = arith.constant 0 : index
    %8 = vector.load %arg5[%c0_8, %c0_9] : memref<1x64xf32, #tpu.memory_space<vmem>>, vector<1x64xf32>
    %9 = vector.broadcast %8 : vector<1x64xf32> to vector<16x64xf32>
    %10 = arith.addf %7, %9 : vector<16x64xf32>
    %11 = arith.negf %10 : vector<16x64xf32>
    %12 = math.exp %11 : vector<16x64xf32>
    %cst_10 = arith.constant 1.000000e+00 : f32
    %13 = vector.broadcast %cst_10 : f32 to vector<16x64xf32>
    %14 = arith.addf %13, %12 : vector<16x64xf32>
    %15 = arith.divf %13, %14 : vector<16x64xf32>
    %16 = arith.mulf %10, %15 : vector<16x64xf32>
    %17 = arith.mulf %5, %16 : vector<16x64xf32>
    %c0_11 = arith.constant 0 : index
    %c0_12 = arith.constant 0 : index
    %18 = vector.load %arg6[%c0_11, %c0_12] : memref<32x64xf32, #tpu.memory_space<vmem>>, vector<32x64xf32>
    %cst_13 = arith.constant dense<0.000000e+00> : vector<16x32xf32>
    %19 = tpu.matmul %17, %18, %cst_13 {dimension_numbers = #tpu.dot_dimension_numbers<[1], [1], [0], [0], [0, 0, 1, 0], [], []>} : vector<16x64xf32>, vector<32x64xf32>, vector<16x32xf32> -> vector<16x32xf32>
    %c0_14 = arith.constant 0 : index
    %c0_15 = arith.constant 0 : index
    %20 = vector.load %arg7[%c0_14, %c0_15] : memref<1x32xf32, #tpu.memory_space<vmem>>, vector<1x32xf32>
    %21 = vector.broadcast %20 : vector<1x32xf32> to vector<16x32xf32>
    %22 = arith.addf %19, %21 : vector<16x32xf32>
    %c0_16 = arith.constant 0 : index
    %c0_17 = arith.constant 0 : index
    %23 = vector.load %arg8[%c0_16, %c0_17] : memref<16x32xf32, #tpu.memory_space<vmem>>, vector<16x32xf32>
    tpu.vector_store %arg8[%c0_16, %c0_17], %22 {strides = array<i32>} : memref<16x32xf32, #tpu.memory_space<vmem>>, vector<16x32xf32>,
    return
  }
  func.func @transform_0(%arg0: i32) -> (i32, i32) {
    %c0_i32 = arith.constant 0 : i32
    %c0_i32_0 = arith.constant 0 : i32
    return %arg0, %c0_i32 : i32, i32
  }
  func.func @transform_1(%arg0: i32) -> (i32, i32) {
    %c0_i32 = arith.constant 0 : i32
    %c0_i32_0 = arith.constant 0 : i32
    %c0_i32_1 = arith.constant 0 : i32
    return %c0_i32, %c0_i32_0 : i32, i32
  }
  func.func @transform_2(%arg0: i32) -> (i32, i32) {
    %c0_i32 = arith.constant 0 : i32
    %c0_i32_0 = arith.constant 0 : i32
    %c0_i32_1 = arith.constant 0 : i32
    return %c0_i32, %c0_i32_0 : i32, i32
  }
  func.func @transform_3(%arg0: i32) -> (i32, i32) {
    %c1_i32 = arith.constant 1 : i32
    %c0_i32 = arith.constant 0 : i32
    %c0_i32_0 = arith.constant 0 : i32
    return %c1_i32, %c0_i32 : i32, i32
  }
  func.func @transform_4(%arg0: i32) -> (i32, i32) {
    %c0_i32 = arith.constant 0 : i32
    %c0_i32_0 = arith.constant 0 : i32
    %c0_i32_1 = arith.constant 0 : i32
    return %c0_i32, %c0_i32_0 : i32, i32
  }
  func.func @transform_5(%arg0: i32) -> (i32, i32) {
    %c0_i32 = arith.constant 0 : i32
    %c0_i32_0 = arith.constant 0 : i32
    %c0_i32_1 = arith.constant 0 : i32
    return %c0_i32, %c0_i32_0 : i32, i32
  }
  func.func @transform_6(%arg0: i32) -> (i32, i32) {
    %c0_i32 = arith.constant 0 : i32
    %c0_i32_0 = arith.constant 0 : i32
    %c0_i32_1 = arith.constant 0 : i32
    return %c0_i32, %c0_i32_0 : i32, i32
  }
  func.func @transform_7(%arg0: i32) -> (i32, i32) {
    %c0_i32 = arith.constant 0 : i32
    %c0_i32_0 = arith.constant 0 : i32
    return %arg0, %c0_i32 : i32, i32
  }
}

module attributes {stable_mosaic.version = 11 : i64} {
  func.func @_gated_mlp_kernel(%arg0: i32, %arg1: memref<16x32xf32, #tpu.memory_space<vmem>>, %arg2: memref<64x32xf32, #tpu.memory_space<vmem>>, %arg3: memref<1x64xf32, #tpu.memory_space<vmem>>, %arg4: memref<64x32xf32, #tpu.memory_space<vmem>>, %arg5: memref<1x64xf32, #tpu.memory_space<vmem>>, %arg6: memref<32x64xf32, #tpu.memory_space<vmem>>, %arg7: memref<1x32xf32, #tpu.memory_space<vmem>>, %arg8: memref<16x32xf32, #tpu.memory_space<vmem>>) attributes {dimension_semantics = [#tpu.dimension_semantics<parallel>], iteration_bounds = array<i64: 1>, scalar_prefetch = 0 : i64, scratch_operands = 0 : i64, tpu.core_type = #tpu.core_type<tc>, window_params = [{transform_indices = @transform_0, window_bounds = array<i64: 16, 32>}, {transform_indices = @transform_1, window_bounds = array<i64: 64, 32>}, {pipeline_mode = #tpu.pipeline_mode<synchronous>, transform_indices = @transform_2, window_bounds = array<i64: 1, 64>}, {transform_indices = @transform_3, window_bounds = array<i64: 64, 32>}, {pipeline_mode = #tpu.pipeline_mode<synchronous>, transform_indices = @transform_4, window_bounds = array<i64: 1, 64>}, {pipeline_mode = #tpu.pipeline_mode<synchronous>, transform_indices = @transform_5, window_bounds = array<i64: 32, 64>}, {pipeline_mode = #tpu.pipeline_mode<synchronous>, transform_indices = @transform_6, window_bounds = array<i64: 1, 32>}, {transform_indices = @transform_7, window_bounds = array<i64: 16, 32>}]} {
    %c0 = arith.constant 0 : index
    %c0_0 = arith.constant 0 : index
    %0 = vector.load %arg1[%c0, %c0_0] : memref<16x32xf32, #tpu.memory_space<vmem>>, vector<16x32xf32>
    %c0_1 = arith.constant 0 : index
    %c0_2 = arith.constant 0 : index
    %1 = vector.load %arg2[%c0_1, %c0_2] : memref<64x32xf32, #tpu.memory_space<vmem>>, vector<64x32xf32>
    %cst = arith.constant dense<0.000000e+00> : vector<16x64xf32>
    %2 = tpu.matmul %0, %1, %cst {dimension_numbers = #tpu.dot_dimension_numbers<[1], [1], [0], [0], [0, 0, 1, 0], [], []>} : vector<16x32xf32>, vector<64x32xf32>, vector<16x64xf32> -> vector<16x64xf32>
    %c0_3 = arith.constant 0 : index
    %c0_4 = arith.constant 0 : index
    %3 = vector.load %arg3[%c0_3, %c0_4] : memref<1x64xf32, #tpu.memory_space<vmem>>, vector<1x64xf32>
    %4 = vector.broadcast %3 : vector<1x64xf32> to vector<16x64xf32>
    %5 = arith.addf %2, %4 : vector<16x64xf32>
    %c0_5 = arith.constant 0 : index
    %c0_6 = arith.constant 0 : index
    %6 = vector.load %arg4[%c0_5, %c0_6] : memref<64x32xf32, #tpu.memory_space<vmem>>, vector<64x32xf32>
    %cst_7 = arith.constant dense<0.000000e+00> : vector<16x64xf32>
    %7 = tpu.matmul %0, %6, %cst_7 {dimension_numbers = #tpu.dot_dimension_numbers<[1], [1], [0], [0], [0, 0, 1, 0], [], []>} : vector<16x32xf32>, vector<64x32xf32>, vector<16x64xf32> -> vector<16x64xf32>
    %c0_8 = arith.constant 0 : index
    %c0_9 = arith.constant 0 : index
    %8 = vector.load %arg5[%c0_8, %c0_9] : memref<1x64xf32, #tpu.memory_space<vmem>>, vector<1x64xf32>
    %9 = vector.broadcast %8 : vector<1x64xf32> to vector<16x64xf32>
    %10 = arith.addf %7, %9 : vector<16x64xf32>
    %11 = arith.negf %10 : vector<16x64xf32>
    %12 = math.exp %11 : vector<16x64xf32>
    %cst_10 = arith.constant 1.000000e+00 : f32
    %13 = vector.broadcast %cst_10 : f32 to vector<16x64xf32>
    %14 = arith.addf %13, %12 : vector<16x64xf32>
    %15 = arith.divf %13, %14 : vector<16x64xf32>
    %16 = arith.mulf %10, %15 : vector<16x64xf32>
    %17 = arith.mulf %5, %16 : vector<16x64xf32>
    %c0_11 = arith.constant 0 : index
    %c0_12 = arith.constant 0 : index
    %18 = vector.load %arg6[%c0_11, %c0_12] : memref<32x64xf32, #tpu.memory_space<vmem>>, vector<32x64xf32>
    %cst_13 = arith.constant dense<0.000000e+00> : vector<16x32xf32>
    %19 = tpu.matmul %17, %18, %cst_13 {dimension_numbers = #tpu.dot_dimension_numbers<[1], [1], [0], [0], [0, 0, 1, 0], [], []>} : vector<16x64xf32>, vector<32x64xf32>, vector<16x32xf32> -> vector<16x32xf32>
    %c0_14 = arith.constant 0 : index
    %c0_15 = arith.constant 0 : index
    %20 = vector.load %arg7[%c0_14, %c0_15] : memref<1x32xf32, #tpu.memory_space<vmem>>, vector<1x32xf32>
    %21 = vector.broadcast %20 : vector<1x32xf32> to vector<16x32xf32>
    %22 = arith.addf %19, %21 : vector<16x32xf32>
    %c0_16 = arith.constant 0 : index
    %c0_17 = arith.constant 0 : index
    %23 = vector.load %arg8[%c0_16, %c0_17] : memref<16x32xf32, #tpu.memory_space<vmem>>, vector<16x32xf32>
    tpu.vector_store %arg8[%c0_16, %c0_17], %22 {strides = array<i32>} : memref<16x32xf32, #tpu.memory_space<vmem>>, vector<16x32xf32>,
    return
  }
  func.func @transform_0(%arg0: i32) -> (i32, i32) {
    %c0_i32 = arith.constant 0 : i32
    %c0_i32_0 = arith.constant 0 : i32
    return %arg0, %c0_i32 : i32, i32
  }
  func.func @transform_1(%arg0: i32) -> (i32, i32) {
    %c0_i32 = arith.constant 0 : i32
    %c0_i32_0 = arith.constant 0 : i32
    %c0_i32_1 = arith.constant 0 : i32
    return %c0_i32, %c0_i32_0 : i32, i32
  }
  func.func @transform_2(%arg0: i32) -> (i32, i32) {
    %c0_i32 = arith.constant 0 : i32
    %c0_i32_0 = arith.constant 0 : i32
    %c0_i32_1 = arith.constant 0 : i32
    return %c0_i32, %c0_i32_0 : i32, i32
  }
  func.func @transform_3(%arg0: i32) -> (i32, i32) {
    %c1_i32 = arith.constant 1 : i32
    %c0_i32 = arith.constant 0 : i32
    %c0_i32_0 = arith.constant 0 : i32
    return %c1_i32, %c0_i32 : i32, i32
  }
  func.func @transform_4(%arg0: i32) -> (i32, i32) {
    %c0_i32 = arith.constant 0 : i32
    %c0_i32_0 = arith.constant 0 : i32
    %c0_i32_1 = arith.constant 0 : i32
    return %c0_i32, %c0_i32_0 : i32, i32
  }
  func.func @transform_5(%arg0: i32) -> (i32, i32) {
    %c0_i32 = arith.constant 0 : i32
    %c0_i32_0 = arith.constant 0 : i32
    %c0_i32_1 = arith.constant 0 : i32
    return %c0_i32, %c0_i32_0 : i32, i32
  }
  func.func @transform_6(%arg0: i32) -> (i32, i32) {
    %c0_i32 = arith.constant 0 : i32
    %c0_i32_0 = arith.constant 0 : i32
    %c0_i32_1 = arith.constant 0 : i32
    return %c0_i32, %c0_i32_0 : i32, i32
  }
  func.func @transform_7(%arg0: i32) -> (i32, i32) {
    %c0_i32 = arith.constant 0 : i32
    %c0_i32_0 = arith.constant 0 : i32
    return %arg0, %c0_i32 : i32, i32
  }
}

</mosaic_0001>

<llo_original>
// kernel: tpu_custom_call.1
$region0: #{tpu_custom_call.1}
  #allocation0 [shape = 'u32[]', space=smem, size = 0x4, offset = 0x4, fixed_abs, tag = 'smem constant byte address 0x4 - core index']
  #allocation1 [shape = 'u32[144,128]{1,0:T(1,128)}', space=vmem, size = 0x12000, scoped, tag = 'internal scratch']
  %s0 = inlined_call_operand.vmem [shape: f32[16,32], index: 0, kind: input, shape index: {}]
  %s1 = inlined_call_operand.vmem [shape: f32[128,32], index: 1, kind: input, shape index: {}]
  %s2 = inlined_call_operand.vmem [shape: f32[1,64], index: 2, kind: input, shape index: {}]
  %s3 = inlined_call_operand.vmem [shape: f32[128,32], index: 3, kind: input, shape index: {}]
  %s4 = inlined_call_operand.vmem [shape: f32[1,64], index: 4, kind: input, shape index: {}]
  %s5 = inlined_call_operand.vmem [shape: f32[32,64], index: 5, kind: input, shape index: {}]
  %s6 = inlined_call_operand.vmem [shape: f32[1,32], index: 6, kind: input, shape index: {}]
  %s7 = inlined_call_operand.hbm [shape: f32[16,32], index: 7, kind: output, shape index: {}]
  %s8 = sld [smem:[#allocation0]]
  $region38: #{tpu_custom_call.1} parent=0
    _
  %s10 = ssub.s32 1, %s8
  %s11 = scalar_select 0, %s10, %s8
  $region1: #{tpu_custom_call.1} parent=0
    #allocation2 [shape = 'u8[8192]{0}', space=vmem, size = 0x2000, scoped, tag = 'output window, operand 0, single buffered']
    #allocation3 [shape = 's32[1]{0}', space=sflag, size = 0x4, scoped, tag = 'scoped memory for tpu_custom_call.1']
    %12 = vsyncpa [#allocation3], 0
    // Predicated region
    $region2: #{tpu_custom_call.1} parent=1 // pred_check
      _
    $region3: #{tpu_custom_call.1} parent=1 // pred_check_branch
      %14 = sbr.rel (0) target = $region5
    $region4: #{tpu_custom_call.1} parent=1 // pred_region
      _
    $region5: #{tpu_custom_call.1} parent=1 // pred_fallthru
      _
    // Predicated region
    $region6: #{tpu_custom_call.1} parent=1 // pred_check
      _
    $region7: #{tpu_custom_call.1} parent=1 // pred_check_branch
      %16 = sbr.rel (0) target = $region9
    $region8: #{tpu_custom_call.1} parent=1 // pred_region
      _
    $region9: #{tpu_custom_call.1} parent=1 // pred_fallthru
      _
    // Predicated region
    $region10: #{tpu_custom_call.1} parent=1 // pred_check
      _
    $region11: #{tpu_custom_call.1} parent=1 // pred_check_branch
      %18 = sbr.rel (0) target = $region13
    $region12: #{tpu_custom_call.1} parent=1 // pred_region
      _
    $region13: #{tpu_custom_call.1} parent=1 // pred_fallthru
      _
    // Predicated region
    $region14: #{tpu_custom_call.1} parent=1 // pred_check
      _
    $region15: #{tpu_custom_call.1} parent=1 // pred_check_branch
      %20 = sbr.rel (0) target = $region17
    $region16: #{tpu_custom_call.1} parent=1 // pred_region
      %s21 = scalar_lea.vmem %s3, 64
    $region17: #{tpu_custom_call.1} parent=1 // pred_fallthru
      _
    // Predicated region
    $region18: #{tpu_custom_call.1} parent=1 // pred_check
      _
    $region19: #{tpu_custom_call.1} parent=1 // pred_check_branch
      %23 = sbr.rel (0) target = $region21
    $region20: #{tpu_custom_call.1} parent=1 // pred_region
      _
    $region21: #{tpu_custom_call.1} parent=1 // pred_fallthru
      _
    // Predicated region
    $region22: #{tpu_custom_call.1} parent=1 // pred_check
      _
    $region23: #{tpu_custom_call.1} parent=1 // pred_check_branch
      %25 = sbr.rel (0) target = $region25
    $region24: #{tpu_custom_call.1} parent=1 // pred_region
      _
    $region25: #{tpu_custom_call.1} parent=1 // pred_fallthru
      _
    // Predicated region
    $region26: #{tpu_custom_call.1} parent=1 // pred_check
      _
    $region27: #{tpu_custom_call.1} parent=1 // pred_check_branch
      %27 = sbr.rel (0) target = $region29
    $region28: #{tpu_custom_call.1} parent=1 // pred_region
      _
    $region29: #{tpu_custom_call.1} parent=1 // pred_fallthru
      _
    %s28 = scalar_lea.vmem %s3, 64
    %s29 = scalar_lea.vmem %s3, 64
    %v30 = vld [vmem:[%s0] sm:$0xff]
    %v31 = vld [vmem:[%s0 + $0x8] sm:$0xff]
    %v32 = vld [vmem:[%s1] sm:$0xff]
    %v33 = vld [vmem:[%s1 + $0x8] sm:$0xff]
    %v34 = vld [vmem:[%s1 + $0x10] sm:$0xff]
    %v35 = vld [vmem:[%s1 + $0x18] sm:$0xff]
    %v36 = vld [vmem:[%s1 + $0x20] sm:$0xff]
    %v37 = vld [vmem:[%s1 + $0x28] sm:$0xff]
    %v38 = vld [vmem:[%s1 + $0x30] sm:$0xff]
    %v39 = vld [vmem:[%s1 + $0x38] sm:$0xff]
    %v40 = vld [vmem:[%s2] sm:$0x1]
    %v42 = vlaneseq
    %v43 = vshrl.u32 %v42, 7
    %v44 = vsub.s32 0, %v43
    %v45 = vrot.slane %v40, %v44
    %vm47 = vcmask 261120
    %v49 = vsel %vm47, %v30, 0
    %v52 = vsel %vm47, %v31, 0
    %v55 = vsel %vm47, %v32, 0
    %v58 = vsel %vm47, %v33, 0
    %v61 = vsel %vm47, %v34, 0
    %v64 = vsel %vm47, %v35, 0
    %v67 = vsel %vm47, %v36, 0
    %v70 = vsel %vm47, %v37, 0
    %v73 = vsel %vm47, %v38, 0
    %v76 = vsel %vm47, %v39, 0
    %78 = vmatprep.subr.mxu0 0.0
    %79 = vmatpush1.xpose.msra.mxu0 %v55
    %80 = vmatprep.subr.mxu0 0.0
    %81 = vmatpush1.xpose.msra.mxu0 %v58
    %82 = vmatprep.subr.mxu0 0.0
    %83 = vmatpush1.xpose.msra.mxu0 %v61
    %84 = vmatprep.subr.mxu0 0.0
    %85 = vmatpush1.xpose.msra.mxu0 %v64
    %86 = vmatprep.subr.mxu0 0.0
    %87 = vmatpush1.xpose.msra.mxu0 %v67
    %88 = vmatprep.subr.mxu0 0.0
    %89 = vmatpush1.xpose.msra.mxu0 %v70
    %90 = vmatprep.subr.mxu0 0.0
    %91 = vmatpush1.xpose.msra.mxu0 %v73
    %92 = vmatprep.subr.mxu0 0.0
    %93 = vmatpush1.xpose.msra.mxu0 %v76
    %94 = vmatprep.subr.mxu0 0.0
    %95 = vmatpush1.xpose.msra.mxu0 0.0
    %96 = vmatprep.subr.mxu0 0.0
    %97 = vmatpush1.xpose.msra.mxu0 0.0
    %98 = vmatprep.subr.mxu0 0.0
    %99 = vmatpush1.xpose.msra.mxu0 0.0
    %100 = vmatprep.subr.mxu0 0.0
    %101 = vmatpush1.xpose.msra.mxu0 0.0
    %102 = vmatprep.subr.mxu0 0.0
    %103 = vmatpush1.xpose.msra.mxu0 0.0
    %104 = vmatprep.subr.mxu0 0.0
    %105 = vmatpush1.xpose.msra.mxu0 0.0
    %106 = vmatprep.subr.mxu0 0.0
    %107 = vmatpush1.xpose.msra.mxu0 0.0
    %108 = vmatprep.subr.mxu0 0.0
    %109 = vmatpush1.xpose.msra.mxu0 0.0
    %110 = vmatprep.subr.mxu0 0.0
    %111 = vmatpush1.xpose.msra.mxu0 0.0
    %112 = vmatprep.subr.mxu0 0.0
    %113 = vmatpush1.xpose.msra.mxu0 0.0
    %114 = vmatprep.subr.mxu0 0.0
    %115 = vmatpush1.xpose.msra.mxu0 0.0
    %116 = vmatprep.subr.mxu0 0.0
    %117 = vmatpush1.xpose.msra.mxu0 0.0
    %118 = vmatprep.subr.mxu0 0.0
    %119 = vmatpush1.xpose.msra.mxu0 0.0
    %120 = vmatprep.subr.mxu0 0.0
    %121 = vmatpush1.xpose.msra.mxu0 0.0
    %122 = vmatprep.subr.mxu0 0.0
    %123 = vmatpush1.xpose.msra.mxu0 0.0
    %124 = vmatprep.subr.mxu0 0.0
    %125 = vmatpush1.xpose.msra.mxu0 0.0
    %126 = vmatprep.subr.mxu0 0.0
    %127 = vmatpush1.xpose.msra.mxu0 0.0
    %128 = vmatprep.subr.mxu0 0.0
    %129 = vmatpush1.xpose.msra.mxu0 0.0
    %130 = vmatprep.subr.mxu0 0.0
    %131 = vmatpush1.xpose.msra.mxu0 0.0
    %132 = vmatprep.subr.mxu0 0.0
    %133 = vmatpush1.xpose.msra.mxu0 0.0
    %134 = vmatprep.subr.mxu0 0.0
    %135 = vmatpush1.xpose.msra.mxu0 0.0
    %136 = vmatprep.subr.mxu0 0.0
    %137 = vmatpush1.xpose.msra.mxu0 0.0
    %138 = vmatprep.subr.mxu0 0.0
    %139 = vmatpush1.xpose.msra.mxu0 0.0
    %140 = vmatprep.subr.mxu0 0.0
    %141 = vmatpush1.xpose.msra.mxu0 0.0
    %142 = vmatprep.mubr.f32.mxu0 0.0
    %143 = vmatmul.mubr.f32.gmra.mrb[0].mxu0 %v49
    %v144 = vpop.f32.mrb[0].mxu0
    %v145 = vadd.f32 %v45, %v144
    %v146 = vpop.f32.mrb[0].mxu0
    %147 = vmatprep.mubr.f32.mxu0 0.0
    %148 = vmatmul.mubr.f32.gmra.mrb[0].mxu0 %v52
    %v149 = vpop.f32.mrb[0].mxu0
    %v150 = vadd.f32 %v45, %v149
    %v151 = vpop.f32.mrb[0].mxu0
    %152 = vdwg.mxu0
    %v153 = vld [vmem:[%s29] sm:$0xff]
    %v154 = vld [vmem:[%s29 + $0x8] sm:$0xff]
    %v155 = vld [vmem:[%s29 + $0x10] sm:$0xff]
    %v156 = vld [vmem:[%s29 + $0x18] sm:$0xff]
    %v157 = vld [vmem:[%s29 + $0x20] sm:$0xff]
    %v158 = vld [vmem:[%s29 + $0x28] sm:$0xff]
    %v159 = vld [vmem:[%s29 + $0x30] sm:$0xff]
    %v160 = vld [vmem:[%s29 + $0x38] sm:$0xff]
    %v161 = vld [vmem:[%s4] sm:$0x1]
    %v163 = vlaneseq
    %v164 = vshrl.u32 %v163, 7
    %v165 = vsub.s32 0, %v164
    %v166 = vrot.slane %v161, %v165
    %v169 = vsel %vm47, %v153, 0
    %v172 = vsel %vm47, %v154, 0
    %v175 = vsel %vm47, %v155, 0
    %v178 = vsel %vm47, %v156, 0
    %v181 = vsel %vm47, %v157, 0
    %v184 = vsel %vm47, %v158, 0
    %v187 = vsel %vm47, %v159, 0
    %v190 = vsel %vm47, %v160, 0
    %192 = vmatprep.subr.mxu0 0.0
    %193 = vmatpush1.xpose.msra.mxu0 %v169
    %194 = vmatprep.subr.mxu0 0.0
    %195 = vmatpush1.xpose.msra.mxu0 %v172
    %196 = vmatprep.subr.mxu0 0.0
    %197 = vmatpush1.xpose.msra.mxu0 %v175
    %198 = vmatprep.subr.mxu0 0.0
    %199 = vmatpush1.xpose.msra.mxu0 %v178
    %200 = vmatprep.subr.mxu0 0.0
    %201 = vmatpush1.xpose.msra.mxu0 %v181
    %202 = vmatprep.subr.mxu0 0.0
    %203 = vmatpush1.xpose.msra.mxu0 %v184
    %204 = vmatprep.subr.mxu0 0.0
    %205 = vmatpush1.xpose.msra.mxu0 %v187
    %206 = vmatprep.subr.mxu0 0.0
    %207 = vmatpush1.xpose.msra.mxu0 %v190
    %208 = vmatprep.subr.mxu0 0.0
    %209 = vmatpush1.xpose.msra.mxu0 0.0
    %210 = vmatprep.subr.mxu0 0.0
    %211 = vmatpush1.xpose.msra.mxu0 0.0
    %212 = vmatprep.subr.mxu0 0.0
    %213 = vmatpush1.xpose.msra.mxu0 0.0
    %214 = vmatprep.subr.mxu0 0.0
    %215 = vmatpush1.xpose.msra.mxu0 0.0
    %216 = vmatprep.subr.mxu0 0.0
    %217 = vmatpush1.xpose.msra.mxu0 0.0
    %218 = vmatprep.subr.mxu0 0.0
    %219 = vmatpush1.xpose.msra.mxu0 0.0
    %220 = vmatprep.subr.mxu0 0.0
    %221 = vmatpush1.xpose.msra.mxu0 0.0
    %222 = vmatprep.subr.mxu0 0.0
    %223 = vmatpush1.xpose.msra.mxu0 0.0
    %224 = vmatprep.subr.mxu0 0.0
    %225 = vmatpush1.xpose.msra.mxu0 0.0
    %226 = vmatprep.subr.mxu0 0.0
    %227 = vmatpush1.xpose.msra.mxu0 0.0
    %228 = vmatprep.subr.mxu0 0.0
    %229 = vmatpush1.xpose.msra.mxu0 0.0
    %230 = vmatprep.subr.mxu0 0.0
    %231 = vmatpush1.xpose.msra.mxu0 0.0
    %232 = vmatprep.subr.mxu0 0.0
    %233 = vmatpush1.xpose.msra.mxu0 0.0
    %234 = vmatprep.subr.mxu0 0.0
    %235 = vmatpush1.xpose.msra.mxu0 0.0
    %236 = vmatprep.subr.mxu0 0.0
    %237 = vmatpush1.xpose.msra.mxu0 0.0
    %238 = vmatprep.subr.mxu0 0.0
    %239 = vmatpush1.xpose.msra.mxu0 0.0
    %240 = vmatprep.subr.mxu0 0.0
    %241 = vmatpush1.xpose.msra.mxu0 0.0
    %242 = vmatprep.subr.mxu0 0.0
    %243 = vmatpush1.xpose.msra.mxu0 0.0
    %244 = vmatprep.subr.mxu0 0.0
    %245 = vmatpush1.xpose.msra.mxu0 0.0
    %246 = vmatprep.subr.mxu0 0.0
    %247 = vmatpush1.xpose.msra.mxu0 0.0
    %248 = vmatprep.subr.mxu0 0.0
    %249 = vmatpush1.xpose.msra.mxu0 0.0
    %250 = vmatprep.subr.mxu0 0.0
    %251 = vmatpush1.xpose.msra.mxu0 0.0
    %252 = vmatprep.subr.mxu0 0.0
    %253 = vmatpush1.xpose.msra.mxu0 0.0
    %254 = vmatprep.subr.mxu0 0.0
    %255 = vmatpush1.xpose.msra.mxu0 0.0
    %256 = vmatprep.mubr.f32.mxu0 0.0
    %257 = vmatmul.mubr.f32.gmra.mrb[0].mxu0 %v49
    %v258 = vpop.f32.mrb[0].mxu0
    %v259 = vadd.f32 %v166, %v258
    %v260 = vpop.f32.mrb[0].mxu0
    %261 = vmatprep.mubr.f32.mxu0 0.0
    %262 = vmatmul.mubr.f32.gmra.mrb[0].mxu0 %v52
    %v263 = vpop.f32.mrb[0].mxu0
    %v264 = vadd.f32 %v166, %v263
    %v265 = vpop.f32.mrb[0].mxu0
    %266 = vdwg.mxu0
    %v267 = vxor.u32 %v259, 2147483648
    %v268 = vxor.u32 %v264, 2147483648
    %v269 = vmul.f32 %v267, 1.442695
    %v270 = vpow.pop %v269
    %v271 = vmul.f32 %v268, 1.442695
    %v272 = vpow.pop %v271
    %v273 = vadd.f32 %v270, 1.0
    %v274 = vadd.f32 %v272, 1.0
    %v275 = vrcp.pop %v273
    %v276 = vmul.f32 1.0, %v275
    %v277 = vrcp.pop %v274
    %v278 = vmul.f32 1.0, %v277
    %v279 = vmul.f32 %v259, %v276
    %v280 = vmul.f32 %v264, %v278
    %v281 = vmul.f32 %v145, %v279
    %v282 = vmul.f32 %v150, %v280
    %v283 = vld [vmem:[%s5] sm:$0xff]
    %v284 = vld [vmem:[%s5 + $0x8] sm:$0xff]
    %v285 = vld [vmem:[%s5 + $0x10] sm:$0xff]
    %v286 = vld [vmem:[%s5 + $0x18] sm:$0xff]
    %v287 = vld [vmem:[%s6] sm:$0x1]
    %v289 = vlaneseq
    %v290 = vshrl.u32 %v289, 7
    %v291 = vsub.s32 0, %v290
    %v292 = vrot.slane %v287, %v291
    %vm294 = vcmask 523264
    %v296 = vsel %vm294, %v281, 0
    %v299 = vsel %vm294, %v282, 0
    %v302 = vsel %vm294, %v283, 0
    %v305 = vsel %vm294, %v284, 0
    %v308 = vsel %vm294, %v285, 0
    %v311 = vsel %vm294, %v286, 0
    %313 = vmatprep.subr.mxu0 0.0
    %314 = vmatpush1.xpose.msra.mxu0 %v302
    %315 = vmatprep.subr.mxu0 0.0
    %316 = vmatpush1.xpose.msra.mxu0 %v305
    %317 = vmatprep.subr.mxu0 0.0
    %318 = vmatpush1.xpose.msra.mxu0 %v308
    %319 = vmatprep.subr.mxu0 0.0
    %320 = vmatpush1.xpose.msra.mxu0 %v311
    %321 = vmatprep.subr.mxu0 0.0
    %322 = vmatpush1.xpose.msra.mxu0 0.0
    %323 = vmatprep.subr.mxu0 0.0
    %324 = vmatpush1.xpose.msra.mxu0 0.0
    %325 = vmatprep.subr.mxu0 0.0
    %326 = vmatpush1.xpose.msra.mxu0 0.0
    %327 = vmatprep.subr.mxu0 0.0
    %328 = vmatpush1.xpose.msra.mxu0 0.0
    %329 = vmatprep.subr.mxu0 0.0
    %330 = vmatpush1.xpose.msra.mxu0 0.0
    %331 = vmatprep.subr.mxu0 0.0
    %332 = vmatpush1.xpose.msra.mxu0 0.0
    %333 = vmatprep.subr.mxu0 0.0
    %334 = vmatpush1.xpose.msra.mxu0 0.0
    %335 = vmatprep.subr.mxu0 0.0
    %336 = vmatpush1.xpose.msra.mxu0 0.0
    %337 = vmatprep.subr.mxu0 0.0
    %338 = vmatpush1.xpose.msra.mxu0 0.0
    %339 = vmatprep.subr.mxu0 0.0
    %340 = vmatpush1.xpose.msra.mxu0 0.0
    %341 = vmatprep.subr.mxu0 0.0
    %342 = vmatpush1.xpose.msra.mxu0 0.0
    %343 = vmatprep.subr.mxu0 0.0
    %344 = vmatpush1.xpose.msra.mxu0 0.0
    %345 = vmatprep.subr.mxu0 0.0
    %346 = vmatpush1.xpose.msra.mxu0 0.0
    %347 = vmatprep.subr.mxu0 0.0
    %348 = vmatpush1.xpose.msra.mxu0 0.0
    %349 = vmatprep.subr.mxu0 0.0
    %350 = vmatpush1.xpose.msra.mxu0 0.0
    %351 = vmatprep.subr.mxu0 0.0
    %352 = vmatpush1.xpose.msra.mxu0 0.0
    %353 = vmatprep.subr.mxu0 0.0
    %354 = vmatpush1.xpose.msra.mxu0 0.0
    %355 = vmatprep.subr.mxu0 0.0
    %356 = vmatpush1.xpose.msra.mxu0 0.0
    %357 = vmatprep.subr.mxu0 0.0
    %358 = vmatpush1.xpose.msra.mxu0 0.0
    %359 = vmatprep.subr.mxu0 0.0
    %360 = vmatpush1.xpose.msra.mxu0 0.0
    %361 = vmatprep.subr.mxu0 0.0
    %362 = vmatpush1.xpose.msra.mxu0 0.0
    %363 = vmatprep.subr.mxu0 0.0
    %364 = vmatpush1.xpose.msra.mxu0 0.0
    %365 = vmatprep.subr.mxu0 0.0
    %366 = vmatpush1.xpose.msra.mxu0 0.0
    %367 = vmatprep.subr.mxu0 0.0
    %368 = vmatpush1.xpose.msra.mxu0 0.0
    %369 = vmatprep.subr.mxu0 0.0
    %370 = vmatpush1.xpose.msra.mxu0 0.0
    %371 = vmatprep.subr.mxu0 0.0
    %372 = vmatpush1.xpose.msra.mxu0 0.0
    %373 = vmatprep.subr.mxu0 0.0
    %374 = vmatpush1.xpose.msra.mxu0 0.0
    %375 = vmatprep.subr.mxu0 0.0
    %376 = vmatpush1.xpose.msra.mxu0 0.0
    %377 = vmatprep.mubr.f32.mxu0 0.0
    %378 = vmatmul.mubr.f32.gmra.mrb[0].mxu0 %v296
    %v379 = vpop.f32.mrb[0].mxu0
    %v380 = vadd.f32 %v292, %v379
    %v381 = vpop.f32.mrb[0].mxu0
    %382 = vmatprep.mubr.f32.mxu0 0.0
    %383 = vmatmul.mubr.f32.gmra.mrb[0].mxu0 %v299
    %v384 = vpop.f32.mrb[0].mxu0
    %v385 = vadd.f32 %v292, %v384
    %v386 = vpop.f32.mrb[0].mxu0
    %387 = vdwg.mxu0
    %388 = vst.msk [vmem:[#allocation2] sm:$0xff] %vm47, %v380
    %389 = vst.msk [vmem:[#allocation2 + $0x8] sm:$0xff] %vm47, %v385
    // Predicated region
    $region30: #{tpu_custom_call.1} parent=1 // pred_check
      _
    $region31: #{tpu_custom_call.1} parent=1 // pred_check_branch
      %391 = sbr.rel (0) target = $region33
    $region32: #{tpu_custom_call.1} parent=1 // pred_region
      %s393 = ssub.s32 256, 256
      %394 = vsyncadd [#allocation3], %s393
      %s395 = sshll.u32 [#allocation2], 4
      %s396 = int_to_ptr.vmem [resolvable:$true] %s395
      %401 = dma.vmem_to_hbm [thread:$0]  %s396, 256, %s7, [#allocation3], 128, 128, 8
    $region33: #{tpu_custom_call.1} parent=1 // pred_fallthru
      _
    // Predicated region
    $region34: #{tpu_custom_call.1} parent=1 // pred_check
      _
    $region35: #{tpu_custom_call.1} parent=1 // pred_check_branch
      %403 = sbr.rel (0) target = $region37
    $region36: #{tpu_custom_call.1} parent=1 // pred_region
      %404 = dma.done [#allocation3], 256
    $region37: #{tpu_custom_call.1} parent=1 // pred_fallthru
      _
    %405 = vsyncpa [#allocation3], 1

// kernel: tpu_custom_call.1
$region0: #{tpu_custom_call.1}
  #allocation0 [shape = 'u32[]', space=smem, size = 0x4, offset = 0x4, fixed_abs, tag = 'smem constant byte address 0x4 - core index']
  #allocation1 [shape = 'u32[144,128]{1,0:T(1,128)}', space=vmem, size = 0x12000, scoped, tag = 'internal scratch']
  %s0 = inlined_call_operand.vmem [shape: f32[16,32], index: 0, kind: input, shape index: {}]
  %s1 = inlined_call_operand.vmem [shape: f32[128,32], index: 1, kind: input, shape index: {}]
  %s2 = inlined_call_operand.vmem [shape: f32[1,64], index: 2, kind: input, shape index: {}]
  %s3 = inlined_call_operand.vmem [shape: f32[128,32], index: 3, kind: input, shape index: {}]
  %s4 = inlined_call_operand.vmem [shape: f32[1,64], index: 4, kind: input, shape index: {}]
  %s5 = inlined_call_operand.vmem [shape: f32[32,64], index: 5, kind: input, shape index: {}]
  %s6 = inlined_call_operand.vmem [shape: f32[1,32], index: 6, kind: input, shape index: {}]
  %s7 = inlined_call_operand.hbm [shape: f32[16,32], index: 7, kind: output, shape index: {}]
  %s8 = sld [smem:[#allocation0]]
  $region38: #{tpu_custom_call.1} parent=0
    _
  %s10 = ssub.s32 1, %s8
  %s11 = scalar_select 0, %s10, %s8
  $region1: #{tpu_custom_call.1} parent=0
    #allocation2 [shape = 'u8[8192]{0}', space=vmem, size = 0x2000, scoped, tag = 'output window, operand 0, single buffered']
    #allocation3 [shape = 's32[1]{0}', space=sflag, size = 0x4, scoped, tag = 'scoped memory for tpu_custom_call.1']
    %12 = vsyncpa [#allocation3], 0
    // Predicated region
    $region2: #{tpu_custom_call.1} parent=1 // pred_check
      _
    $region3: #{tpu_custom_call.1} parent=1 // pred_check_branch
      %14 = sbr.rel (0) target = $region5
    $region4: #{tpu_custom_call.1} parent=1 // pred_region
      _
    $region5: #{tpu_custom_call.1} parent=1 // pred_fallthru
      _
    // Predicated region
    $region6: #{tpu_custom_call.1} parent=1 // pred_check
      _
    $region7: #{tpu_custom_call.1} parent=1 // pred_check_branch
      %16 = sbr.rel (0) target = $region9
    $region8: #{tpu_custom_call.1} parent=1 // pred_region
      _
    $region9: #{tpu_custom_call.1} parent=1 // pred_fallthru
      _
    // Predicated region
    $region10: #{tpu_custom_call.1} parent=1 // pred_check
      _
    $region11: #{tpu_custom_call.1} parent=1 // pred_check_branch
      %18 = sbr.rel (0) target = $region13
    $region12: #{tpu_custom_call.1} parent=1 // pred_region
      _
    $region13: #{tpu_custom_call.1} parent=1 // pred_fallthru
      _
    // Predicated region
    $region14: #{tpu_custom_call.1} parent=1 // pred_check
      _
    $region15: #{tpu_custom_call.1} parent=1 // pred_check_branch
      %20 = sbr.rel (0) target = $region17
    $region16: #{tpu_custom_call.1} parent=1 // pred_region
      %s21 = scalar_lea.vmem %s3, 64
    $region17: #{tpu_custom_call.1} parent=1 // pred_fallthru
      _
    // Predicated region
    $region18: #{tpu_custom_call.1} parent=1 // pred_check
      _
    $region19: #{tpu_custom_call.1} parent=1 // pred_check_branch
      %23 = sbr.rel (0) target = $region21
    $region20: #{tpu_custom_call.1} parent=1 // pred_region
      _
    $region21: #{tpu_custom_call.1} parent=1 // pred_fallthru
      _
    // Predicated region
    $region22: #{tpu_custom_call.1} parent=1 // pred_check
      _
    $region23: #{tpu_custom_call.1} parent=1 // pred_check_branch
      %25 = sbr.rel (0) target = $region25
    $region24: #{tpu_custom_call.1} parent=1 // pred_region
      _
    $region25: #{tpu_custom_call.1} parent=1 // pred_fallthru
      _
    // Predicated region
    $region26: #{tpu_custom_call.1} parent=1 // pred_check
      _
    $region27: #{tpu_custom_call.1} parent=1 // pred_check_branch
      %27 = sbr.rel (0) target = $region29
    $region28: #{tpu_custom_call.1} parent=1 // pred_region
      _
    $region29: #{tpu_custom_call.1} parent=1 // pred_fallthru
      _
    %s28 = scalar_lea.vmem %s3, 64
    %s29 = scalar_lea.vmem %s3, 64
    %v30 = vld [vmem:[%s0] sm:$0xff]
    %v31 = vld [vmem:[%s0 + $0x8] sm:$0xff]
    %v32 = vld [vmem:[%s1] sm:$0xff]
    %v33 = vld [vmem:[%s1 + $0x8] sm:$0xff]
    %v34 = vld [vmem:[%s1 + $0x10] sm:$0xff]
    %v35 = vld [vmem:[%s1 + $0x18] sm:$0xff]
    %v36 = vld [vmem:[%s1 + $0x20] sm:$0xff]
    %v37 = vld [vmem:[%s1 + $0x28] sm:$0xff]
    %v38 = vld [vmem:[%s1 + $0x30] sm:$0xff]
    %v39 = vld [vmem:[%s1 + $0x38] sm:$0xff]
    %v40 = vld [vmem:[%s2] sm:$0x1]
    %v42 = vlaneseq
    %v43 = vshrl.u32 %v42, 7
    %v44 = vsub.s32 0, %v43
    %v45 = vrot.slane %v40, %v44
    %vm47 = vcmask 261120
    %v49 = vsel %vm47, %v30, 0
    %v52 = vsel %vm47, %v31, 0
    %v55 = vsel %vm47, %v32, 0
    %v58 = vsel %vm47, %v33, 0
    %v61 = vsel %vm47, %v34, 0
    %v64 = vsel %vm47, %v35, 0
    %v67 = vsel %vm47, %v36, 0
    %v70 = vsel %vm47, %v37, 0
    %v73 = vsel %vm47, %v38, 0
    %v76 = vsel %vm47, %v39, 0
    %78 = vmatprep.subr.mxu0 0.0
    %79 = vmatpush1.xpose.msra.mxu0 %v55
    %80 = vmatprep.subr.mxu0 0.0
    %81 = vmatpush1.xpose.msra.mxu0 %v58
    %82 = vmatprep.subr.mxu0 0.0
    %83 = vmatpush1.xpose.msra.mxu0 %v61
    %84 = vmatprep.subr.mxu0 0.0
    %85 = vmatpush1.xpose.msra.mxu0 %v64
    %86 = vmatprep.subr.mxu0 0.0
    %87 = vmatpush1.xpose.msra.mxu0 %v67
    %88 = vmatprep.subr.mxu0 0.0
    %89 = vmatpush1.xpose.msra.mxu0 %v70
    %90 = vmatprep.subr.mxu0 0.0
    %91 = vmatpush1.xpose.msra.mxu0 %v73
    %92 = vmatprep.subr.mxu0 0.0
    %93 = vmatpush1.xpose.msra.mxu0 %v76
    %94 = vmatprep.subr.mxu0 0.0
    %95 = vmatpush1.xpose.msra.mxu0 0.0
    %96 = vmatprep.subr.mxu0 0.0
    %97 = vmatpush1.xpose.msra.mxu0 0.0
    %98 = vmatprep.subr.mxu0 0.0
    %99 = vmatpush1.xpose.msra.mxu0 0.0
    %100 = vmatprep.subr.mxu0 0.0
    %101 = vmatpush1.xpose.msra.mxu0 0.0
    %102 = vmatprep.subr.mxu0 0.0
    %103 = vmatpush1.xpose.msra.mxu0 0.0
    %104 = vmatprep.subr.mxu0 0.0
    %105 = vmatpush1.xpose.msra.mxu0 0.0
    %106 = vmatprep.subr.mxu0 0.0
    %107 = vmatpush1.xpose.msra.mxu0 0.0
    %108 = vmatprep.subr.mxu0 0.0
    %109 = vmatpush1.xpose.msra.mxu0 0.0
    %110 = vmatprep.subr.mxu0 0.0
    %111 = vmatpush1.xpose.msra.mxu0 0.0
    %112 = vmatprep.subr.mxu0 0.0
    %113 = vmatpush1.xpose.msra.mxu0 0.0
    %114 = vmatprep.subr.mxu0 0.0
    %115 = vmatpush1.xpose.msra.mxu0 0.0
    %116 = vmatprep.subr.mxu0 0.0
    %117 = vmatpush1.xpose.msra.mxu0 0.0
    %118 = vmatprep.subr.mxu0 0.0
    %119 = vmatpush1.xpose.msra.mxu0 0.0
    %120 = vmatprep.subr.mxu0 0.0
    %121 = vmatpush1.xpose.msra.mxu0 0.0
    %122 = vmatprep.subr.mxu0 0.0
    %123 = vmatpush1.xpose.msra.mxu0 0.0
    %124 = vmatprep.subr.mxu0 0.0
    %125 = vmatpush1.xpose.msra.mxu0 0.0
    %126 = vmatprep.subr.mxu0 0.0
    %127 = vmatpush1.xpose.msra.mxu0 0.0
    %128 = vmatprep.subr.mxu0 0.0
    %129 = vmatpush1.xpose.msra.mxu0 0.0
    %130 = vmatprep.subr.mxu0 0.0
    %131 = vmatpush1.xpose.msra.mxu0 0.0
    %132 = vmatprep.subr.mxu0 0.0
    %133 = vmatpush1.xpose.msra.mxu0 0.0
    %134 = vmatprep.subr.mxu0 0.0
    %135 = vmatpush1.xpose.msra.mxu0 0.0
    %136 = vmatprep.subr.mxu0 0.0
    %137 = vmatpush1.xpose.msra.mxu0 0.0
    %138 = vmatprep.subr.mxu0 0.0
    %139 = vmatpush1.xpose.msra.mxu0 0.0
    %140 = vmatprep.subr.mxu0 0.0
    %141 = vmatpush1.xpose.msra.mxu0 0.0
    %142 = vmatprep.mubr.f32.mxu0 0.0
    %143 = vmatmul.mubr.f32.gmra.mrb[0].mxu0 %v49
    %v144 = vpop.f32.mrb[0].mxu0
    %v145 = vadd.f32 %v45, %v144
    %v146 = vpop.f32.mrb[0].mxu0
    %147 = vmatprep.mubr.f32.mxu0 0.0
    %148 = vmatmul.mubr.f32.gmra.mrb[0].mxu0 %v52
    %v149 = vpop.f32.mrb[0].mxu0
    %v150 = vadd.f32 %v45, %v149
    %v151 = vpop.f32.mrb[0].mxu0
    %152 = vdwg.mxu0
    %v153 = vld [vmem:[%s29] sm:$0xff]
    %v154 = vld [vmem:[%s29 + $0x8] sm:$0xff]
    %v155 = vld [vmem:[%s29 + $0x10] sm:$0xff]
    %v156 = vld [vmem:[%s29 + $0x18] sm:$0xff]
    %v157 = vld [vmem:[%s29 + $0x20] sm:$0xff]
    %v158 = vld [vmem:[%s29 + $0x28] sm:$0xff]
    %v159 = vld [vmem:[%s29 + $0x30] sm:$0xff]
    %v160 = vld [vmem:[%s29 + $0x38] sm:$0xff]
    %v161 = vld [vmem:[%s4] sm:$0x1]
    %v163 = vlaneseq
    %v164 = vshrl.u32 %v163, 7
    %v165 = vsub.s32 0, %v164
    %v166 = vrot.slane %v161, %v165
    %v169 = vsel %vm47, %v153, 0
    %v172 = vsel %vm47, %v154, 0
    %v175 = vsel %vm47, %v155, 0
    %v178 = vsel %vm47, %v156, 0
    %v181 = vsel %vm47, %v157, 0
    %v184 = vsel %vm47, %v158, 0
    %v187 = vsel %vm47, %v159, 0
    %v190 = vsel %vm47, %v160, 0
    %192 = vmatprep.subr.mxu0 0.0
    %193 = vmatpush1.xpose.msra.mxu0 %v169
    %194 = vmatprep.subr.mxu0 0.0
    %195 = vmatpush1.xpose.msra.mxu0 %v172
    %196 = vmatprep.subr.mxu0 0.0
    %197 = vmatpush1.xpose.msra.mxu0 %v175
    %198 = vmatprep.subr.mxu0 0.0
    %199 = vmatpush1.xpose.msra.mxu0 %v178
    %200 = vmatprep.subr.mxu0 0.0
    %201 = vmatpush1.xpose.msra.mxu0 %v181
    %202 = vmatprep.subr.mxu0 0.0
    %203 = vmatpush1.xpose.msra.mxu0 %v184
    %204 = vmatprep.subr.mxu0 0.0
    %205 = vmatpush1.xpose.msra.mxu0 %v187
    %206 = vmatprep.subr.mxu0 0.0
    %207 = vmatpush1.xpose.msra.mxu0 %v190
    %208 = vmatprep.subr.mxu0 0.0
    %209 = vmatpush1.xpose.msra.mxu0 0.0
    %210 = vmatprep.subr.mxu0 0.0
    %211 = vmatpush1.xpose.msra.mxu0 0.0
    %212 = vmatprep.subr.mxu0 0.0
    %213 = vmatpush1.xpose.msra.mxu0 0.0
    %214 = vmatprep.subr.mxu0 0.0
    %215 = vmatpush1.xpose.msra.mxu0 0.0
    %216 = vmatprep.subr.mxu0 0.0
    %217 = vmatpush1.xpose.msra.mxu0 0.0
    %218 = vmatprep.subr.mxu0 0.0
    %219 = vmatpush1.xpose.msra.mxu0 0.0
    %220 = vmatprep.subr.mxu0 0.0
    %221 = vmatpush1.xpose.msra.mxu0 0.0
    %222 = vmatprep.subr.mxu0 0.0
    %223 = vmatpush1.xpose.msra.mxu0 0.0
    %224 = vmatprep.subr.mxu0 0.0
    %225 = vmatpush1.xpose.msra.mxu0 0.0
    %226 = vmatprep.subr.mxu0 0.0
    %227 = vmatpush1.xpose.msra.mxu0 0.0
    %228 = vmatprep.subr.mxu0 0.0
    %229 = vmatpush1.xpose.msra.mxu0 0.0
    %230 = vmatprep.subr.mxu0 0.0
    %231 = vmatpush1.xpose.msra.mxu0 0.0
    %232 = vmatprep.subr.mxu0 0.0
    %233 = vmatpush1.xpose.msra.mxu0 0.0
    %234 = vmatprep.subr.mxu0 0.0
    %235 = vmatpush1.xpose.msra.mxu0 0.0
    %236 = vmatprep.subr.mxu0 0.0
    %237 = vmatpush1.xpose.msra.mxu0 0.0
    %238 = vmatprep.subr.mxu0 0.0
    %239 = vmatpush1.xpose.msra.mxu0 0.0
    %240 = vmatprep.subr.mxu0 0.0
    %241 = vmatpush1.xpose.msra.mxu0 0.0
    %242 = vmatprep.subr.mxu0 0.0
    %243 = vmatpush1.xpose.msra.mxu0 0.0
    %244 = vmatprep.subr.mxu0 0.0
    %245 = vmatpush1.xpose.msra.mxu0 0.0
    %246 = vmatprep.subr.mxu0 0.0
    %247 = vmatpush1.xpose.msra.mxu0 0.0
    %248 = vmatprep.subr.mxu0 0.0
    %249 = vmatpush1.xpose.msra.mxu0 0.0
    %250 = vmatprep.subr.mxu0 0.0
    %251 = vmatpush1.xpose.msra.mxu0 0.0
    %252 = vmatprep.subr.mxu0 0.0
    %253 = vmatpush1.xpose.msra.mxu0 0.0
    %254 = vmatprep.subr.mxu0 0.0
    %255 = vmatpush1.xpose.msra.mxu0 0.0
    %256 = vmatprep.mubr.f32.mxu0 0.0
    %257 = vmatmul.mubr.f32.gmra.mrb[0].mxu0 %v49
    %v258 = vpop.f32.mrb[0].mxu0
    %v259 = vadd.f32 %v166, %v258
    %v260 = vpop.f32.mrb[0].mxu0
    %261 = vmatprep.mubr.f32.mxu0 0.0
    %262 = vmatmul.mubr.f32.gmra.mrb[0].mxu0 %v52
    %v263 = vpop.f32.mrb[0].mxu0
    %v264 = vadd.f32 %v166, %v263
    %v265 = vpop.f32.mrb[0].mxu0
    %266 = vdwg.mxu0
    %v267 = vxor.u32 %v259, 2147483648
    %v268 = vxor.u32 %v264, 2147483648
    %v269 = vmul.f32 %v267, 1.442695
    %v270 = vpow.pop %v269
    %v271 = vmul.f32 %v268, 1.442695
    %v272 = vpow.pop %v271
    %v273 = vadd.f32 %v270, 1.0
    %v274 = vadd.f32 %v272, 1.0
    %v275 = vrcp.pop %v273
    %v276 = vmul.f32 1.0, %v275
    %v277 = vrcp.pop %v274
    %v278 = vmul.f32 1.0, %v277
    %v279 = vmul.f32 %v259, %v276
    %v280 = vmul.f32 %v264, %v278
    %v281 = vmul.f32 %v145, %v279
    %v282 = vmul.f32 %v150, %v280
    %v283 = vld [vmem:[%s5] sm:$0xff]
    %v284 = vld [vmem:[%s5 + $0x8] sm:$0xff]
    %v285 = vld [vmem:[%s5 + $0x10] sm:$0xff]
    %v286 = vld [vmem:[%s5 + $0x18] sm:$0xff]
    %v287 = vld [vmem:[%s6] sm:$0x1]
    %v289 = vlaneseq
    %v290 = vshrl.u32 %v289, 7
    %v291 = vsub.s32 0, %v290
    %v292 = vrot.slane %v287, %v291
    %vm294 = vcmask 523264
    %v296 = vsel %vm294, %v281, 0
    %v299 = vsel %vm294, %v282, 0
    %v302 = vsel %vm294, %v283, 0
    %v305 = vsel %vm294, %v284, 0
    %v308 = vsel %vm294, %v285, 0
    %v311 = vsel %vm294, %v286, 0
    %313 = vmatprep.subr.mxu0 0.0
    %314 = vmatpush1.xpose.msra.mxu0 %v302
    %315 = vmatprep.subr.mxu0 0.0
    %316 = vmatpush1.xpose.msra.mxu0 %v305
    %317 = vmatprep.subr.mxu0 0.0
    %318 = vmatpush1.xpose.msra.mxu0 %v308
    %319 = vmatprep.subr.mxu0 0.0
    %320 = vmatpush1.xpose.msra.mxu0 %v311
    %321 = vmatprep.subr.mxu0 0.0
    %322 = vmatpush1.xpose.msra.mxu0 0.0
    %323 = vmatprep.subr.mxu0 0.0
    %324 = vmatpush1.xpose.msra.mxu0 0.0
    %325 = vmatprep.subr.mxu0 0.0
    %326 = vmatpush1.xpose.msra.mxu0 0.0
    %327 = vmatprep.subr.mxu0 0.0
    %328 = vmatpush1.xpose.msra.mxu0 0.0
    %329 = vmatprep.subr.mxu0 0.0
    %330 = vmatpush1.xpose.msra.mxu0 0.0
    %331 = vmatprep.subr.mxu0 0.0
    %332 = vmatpush1.xpose.msra.mxu0 0.0
    %333 = vmatprep.subr.mxu0 0.0
    %334 = vmatpush1.xpose.msra.mxu0 0.0
    %335 = vmatprep.subr.mxu0 0.0
    %336 = vmatpush1.xpose.msra.mxu0 0.0
    %337 = vmatprep.subr.mxu0 0.0
    %338 = vmatpush1.xpose.msra.mxu0 0.0
    %339 = vmatprep.subr.mxu0 0.0
    %340 = vmatpush1.xpose.msra.mxu0 0.0
    %341 = vmatprep.subr.mxu0 0.0
    %342 = vmatpush1.xpose.msra.mxu0 0.0
    %343 = vmatprep.subr.mxu0 0.0
    %344 = vmatpush1.xpose.msra.mxu0 0.0
    %345 = vmatprep.subr.mxu0 0.0
    %346 = vmatpush1.xpose.msra.mxu0 0.0
    %347 = vmatprep.subr.mxu0 0.0
    %348 = vmatpush1.xpose.msra.mxu0 0.0
    %349 = vmatprep.subr.mxu0 0.0
    %350 = vmatpush1.xpose.msra.mxu0 0.0
    %351 = vmatprep.subr.mxu0 0.0
    %352 = vmatpush1.xpose.msra.mxu0 0.0
    %353 = vmatprep.subr.mxu0 0.0
    %354 = vmatpush1.xpose.msra.mxu0 0.0
    %355 = vmatprep.subr.mxu0 0.0
    %356 = vmatpush1.xpose.msra.mxu0 0.0
    %357 = vmatprep.subr.mxu0 0.0
    %358 = vmatpush1.xpose.msra.mxu0 0.0
    %359 = vmatprep.subr.mxu0 0.0
    %360 = vmatpush1.xpose.msra.mxu0 0.0
    %361 = vmatprep.subr.mxu0 0.0
    %362 = vmatpush1.xpose.msra.mxu0 0.0
    %363 = vmatprep.subr.mxu0 0.0
    %364 = vmatpush1.xpose.msra.mxu0 0.0
    %365 = vmatprep.subr.mxu0 0.0
    %366 = vmatpush1.xpose.msra.mxu0 0.0
    %367 = vmatprep.subr.mxu0 0.0
    %368 = vmatpush1.xpose.msra.mxu0 0.0
    %369 = vmatprep.subr.mxu0 0.0
    %370 = vmatpush1.xpose.msra.mxu0 0.0
    %371 = vmatprep.subr.mxu0 0.0
    %372 = vmatpush1.xpose.msra.mxu0 0.0
    %373 = vmatprep.subr.mxu0 0.0
    %374 = vmatpush1.xpose.msra.mxu0 0.0
    %375 = vmatprep.subr.mxu0 0.0
    %376 = vmatpush1.xpose.msra.mxu0 0.0
    %377 = vmatprep.mubr.f32.mxu0 0.0
    %378 = vmatmul.mubr.f32.gmra.mrb[0].mxu0 %v296
    %v379 = vpop.f32.mrb[0].mxu0
    %v380 = vadd.f32 %v292, %v379
    %v381 = vpop.f32.mrb[0].mxu0
    %382 = vmatprep.mubr.f32.mxu0 0.0
    %383 = vmatmul.mubr.f32.gmra.mrb[0].mxu0 %v299
    %v384 = vpop.f32.mrb[0].mxu0
    %v385 = vadd.f32 %v292, %v384
    %v386 = vpop.f32.mrb[0].mxu0
    %387 = vdwg.mxu0
    %388 = vst.msk [vmem:[#allocation2] sm:$0xff] %vm47, %v380
    %389 = vst.msk [vmem:[#allocation2 + $0x8] sm:$0xff] %vm47, %v385
    // Predicated region
    $region30: #{tpu_custom_call.1} parent=1 // pred_check
      _
    $region31: #{tpu_custom_call.1} parent=1 // pred_check_branch
      %391 = sbr.rel (0) target = $region33
    $region32: #{tpu_custom_call.1} parent=1 // pred_region
      %s393 = ssub.s32 256, 256
      %394 = vsyncadd [#allocation3], %s393
      %s395 = sshll.u32 [#allocation2], 4
      %s396 = int_to_ptr.vmem [resolvable:$true] %s395
      %401 = dma.vmem_to_hbm [thread:$0]  %s396, 256, %s7, [#allocation3], 128, 128, 8
    $region33: #{tpu_custom_call.1} parent=1 // pred_fallthru
      _
    // Predicated region
    $region34: #{tpu_custom_call.1} parent=1 // pred_check
      _
    $region35: #{tpu_custom_call.1} parent=1 // pred_check_branch
      %403 = sbr.rel (0) target = $region37
    $region36: #{tpu_custom_call.1} parent=1 // pred_region
      %404 = dma.done [#allocation3], 256
    $region37: #{tpu_custom_call.1} parent=1 // pred_fallthru
      _
    %405 = vsyncpa [#allocation3], 1

</llo_original>
